<compile_context>
chip_gen: v5e
topology: v5e:2x2
jax: 0.10.0
libtpu: 0.0.40
codegen_flags: <defaults>
</compile_context>

<pallas_src>
import functools

import jax
import jax.numpy as jnp
from jax.experimental import pallas as pl
from jax.experimental.pallas import tpu as pltpu


# ----------------------------------------------------------------------------
# Pallas kernel: all 11 (x_way, y_way, z_way) coupling paths fused, summed
# per z_way.  Refs have block shape (13, sub, tile_n); n_chunks = tile_n // 128.
# ----------------------------------------------------------------------------
def tpl_kernel(x_ref, y_ref, o_ref, *, n_chunks):
    f32 = jnp.float32
    out_dt = o_ref.dtype

    @pl.loop(0, n_chunks)
    def _(c):
        # 128-lane aligned column window of the current block.
        col = pl.ds(pl.multiple_of(c * 128, 128), 128)

        # Hoisted loads: every input row is read from VMEM exactly once per
        # column chunk (26 loads), then reused for all 13 outputs.
        xs = [x_ref[r, :, col].astype(f32) for r in range(13)]
        ys = [y_ref[r, :, col].astype(f32) for r in range(13)]
        x0, x1, x2 = xs[0], xs[1:4], xs[4:13]
        y0, y1, y2 = ys[0], ys[1:4], ys[4:13]

        # -------------- z_way = 0 : (0,0,0) + (1,1,0) + (2,2,0) --------------
        acc = x0 * y0
        for j in range(3):                      # (1,1,0): full contraction
            acc = acc + x1[j] * y1[j]
        for m in range(9):                      # (2,2,0): full contraction
            acc = acc + x2[m] * y2[m]
        o_ref[0, :, col] = acc.astype(out_dt)

        # ------- z_way = 1 : (0,1,1) + (1,0,1) + (1,2,1) + (2,1,1) -----------
        for i in range(3):
            acc = x0 * y1[i] + x1[i] * y0
            for j in range(3):
                acc = acc + x1[j] * y2[3 * j + i]   # (1,2,1): sum_j x1[j] y2[j,i]
                acc = acc + x2[3 * i + j] * y1[j]   # (2,1,1): sum_j x2[i,j] y1[j]
            o_ref[1 + i, :, col] = acc.astype(out_dt)

        # ------- z_way = 2 : (0,2,2) + (1,1,2) + (2,0,2) + (2,2,2) -----------
        for i in range(3):
            for k in range(3):
                acc = x0 * y2[3 * i + k]            # (0,2,2)
                acc = acc + x1[i] * y1[k]           # (1,1,2): outer product
                acc = acc + x2[3 * i + k] * y0      # (2,0,2)
                for j in range(3):                  # (2,2,2): sum_j x2[i,j] y2[j,k]
                    acc = acc + x2[3 * i + j] * y2[3 * j + k]
                o_ref[4 + 3 * i + k, :, col] = acc.astype(out_dt)


# ----------------------------------------------------------------------------
# Wrapper: layout plumbing + pallas_call
# ----------------------------------------------------------------------------
def tensor_product_layer(x, y, tile_n=2048):
    """x, y: dicts {0: [B,C], 1: [B,C,3], 2: [B,C,3,3]} -> same-structured output.

    All three ways (0, 1, 2) must be present in both dicts (the defaults of the
    PyTorch module).  x and y may have different dtypes; each is kept in its own
    dtype through HBM and the output dtype is their promotion.
    """
    B, C = x[0].shape
    N = B * C

    # Per-operand dtype (do NOT force y into x's dtype).
    x_dt = jnp.result_type(*(x[w].dtype for w in range(3)))
    y_dt = jnp.result_type(*(y[w].dtype for w in range(3)))
    out_dt = jnp.result_type(x_dt, y_dt)

    # Sublane block height: match the packed vreg tile when everything is
    # 16-bit (bf16 tile is (16,128)); otherwise the f32 tile height of 8.
    sub = 16 if all(jnp.dtype(d).itemsize == 2 for d in (x_dt, y_dt, out_dt)) else 8

    # Shrink the lane tile for tiny problems (don't pad a handful of samples to
    # 16k lanes); keep it a power of two >= 128 so it stays lane-aligned.
    tile_n = int(min(tile_n, max(128, pl.next_power_of_2(pl.cdiv(N, sub)))))
    n_chunks = tile_n // 128

    chunk = sub * tile_n                      # samples handled per grid step
    G = pl.cdiv(N, chunk)
    Np = G * chunk

    def pack(t_dict, dt):
        # -> slab [13, G*sub, tile_n]; rows 0 / 1:4 / 4:13 = ways 0 / 1 / 2.
        rows = [t_dict[w].reshape(N, 3 ** w).T for w in range(3)]
        slab = jnp.concatenate(rows, axis=0).astype(dt)       # (13, N)
        slab = jnp.pad(slab, ((0, 0), (0, Np - N)))           # zero tail: harmless
        return slab.reshape(13, G * sub, tile_n)

    xs = pack(x, x_dt)
    ys = pack(y, y_dt)

    spec = pl.BlockSpec((13, sub, tile_n), lambda n: (0, n, 0))

    o = pl.pallas_call(
        functools.partial(tpl_kernel, n_chunks=n_chunks),
        out_shape=jax.ShapeDtypeStruct((13, G * sub, tile_n), out_dt),
        grid_spec=pltpu.PrefetchScalarGridSpec(
            num_scalar_prefetch=0,
            grid=(G,),
            in_specs=[spec, spec],
            out_specs=spec,
        ),
        compiler_params=pltpu.CompilerParams(
            # Independent grid steps: lets v7x shard them across both TCs.
            dimension_semantics=("parallel",),
            # Cheap insurance for tile-size sweeps; actual footprint is ~5 MiB.
            vmem_limit_bytes=32 * 1024 * 1024,
        ),
    )(xs, ys)

    o = o.reshape(13, Np)[:, :N]
    return {
        0: o[0].reshape(B, C),
        1: o[1:4].T.reshape(B, C, 3),
        2: o[4:13].T.reshape(B, C, 3, 3),
    }


# ----------------------------------------------------------------------------
# Pure-JAX reference (mirrors _aggregate_new + the forward's dict accumulation)
# ----------------------------------------------------------------------------
def _combinations(max_x_way=2, max_y_way=2, max_z_way=2):
    combos = []
    for x_way in range(max_x_way + 1):
        for y_way in range(max_y_way + 1):
            for z_way in range(abs(y_way - x_way),
                               min(max_z_way, x_way + y_way) + 1, 2):
                combos.append((x_way, y_way, z_way))
    return combos


def _aggregate_ref(xt, yt, x_way, y_way, z_way):
    coupling = (x_way + y_way - z_way) // 2
    lx = 'ijk'[:x_way]
    cont = lx[x_way - coupling:] if coupling > 0 else ''
    ly = cont + 'lmn'[:y_way - coupling]
    lz = lx[:x_way - coupling] + 'lmn'[:y_way - coupling]
    return jnp.einsum(f'bc{lx},bc{ly}->bc{lz}', xt, yt)


def tensor_product_layer_ref(x, y):
    out = {}
    for x_way, y_way, z_way in _combinations():
        if x_way not in x or y_way not in y:
            continue
        t = _aggregate_ref(x[x_way], y[y_way], x_way, y_way, z_way)
        out[z_way] = t if z_way not in out else out[z_way] + t
    return out


# ----------------------------------------------------------------------------
if __name__ == "__main__":
    B, C = 2, 4          # batch, channels (nc=4); TensorProductLayer has no weights
    key = jax.random.PRNGKey(0)
    keys = jax.random.split(key, 6)
    x = {0: jax.random.normal(keys[0], (B, C), jnp.float32),
         1: jax.random.normal(keys[1], (B, C, 3), jnp.float32),
         2: jax.random.normal(keys[2], (B, C, 3, 3), jnp.float32)}
    y = {0: jax.random.normal(keys[3], (B, C), jnp.float32),
         1: jax.random.normal(keys[4], (B, C, 3), jnp.float32),
         2: jax.random.normal(keys[5], (B, C, 3, 3), jnp.float32)}

    out = tensor_product_layer(x, y)
    jax.block_until_ready(out)

    ref = tensor_product_layer_ref(x, y)
    for z in (0, 1, 2):
        assert out[z].shape == ref[z].shape, (z, out[z].shape, ref[z].shape)
        assert jnp.allclose(out[z], ref[z], atol=1e-5, rtol=1e-5), f"mismatch z={z}"

    print("KERNEL_OK")
</pallas_src>

<mosaic_0001>
module attributes {stable_mosaic.version = 11 : i64} {
  func.func @tpl_kernel(%arg0: i32, %arg1: memref<13x8x128xf32, #tpu.memory_space<vmem>>, %arg2: memref<13x8x128xf32, #tpu.memory_space<vmem>>, %arg3: memref<13x8x128xf32, #tpu.memory_space<vmem>>) attributes {dimension_semantics = [#tpu.dimension_semantics<parallel>], iteration_bounds = array<i64: 1>, scalar_prefetch = 0 : i64, scratch_operands = 0 : i64, tpu.core_type = #tpu.core_type<tc>, window_params = [{transform_indices = @transform_0, window_bounds = array<i64: 13, 8, 128>}, {transform_indices = @transform_1, window_bounds = array<i64: 13, 8, 128>}, {transform_indices = @transform_2, window_bounds = array<i64: 13, 8, 128>}]} {
    %c0_i32 = arith.constant 0 : i32
    %c1_i32 = arith.constant 1 : i32
    %0 = arith.muli %c0_i32, %c1_i32 : i32
    %c0_i32_0 = arith.constant 0 : i32
    %1 = arith.addi %c0_i32_0, %0 : i32
    %c128_i32 = arith.constant 128 : i32
    %2 = arith.muli %1, %c128_i32 : i32
    %3 = tpu.assume_multiple %2, 128 : i32
    %c0 = arith.constant 0 : index
    %c0_1 = arith.constant 0 : index
    %4 = arith.index_cast %3 : i32 to index
    %5 = vector.load %arg1[%c0, %c0_1, %4] : memref<13x8x128xf32, #tpu.memory_space<vmem>>, vector<1x8x128xf32>
    %6 = vector.shape_cast %5 : vector<1x8x128xf32> to vector<8x128xf32>
    %c1 = arith.constant 1 : index
    %c0_2 = arith.constant 0 : index
    %7 = arith.index_cast %3 : i32 to index
    %8 = vector.load %arg1[%c1, %c0_2, %7] : memref<13x8x128xf32, #tpu.memory_space<vmem>>, vector<1x8x128xf32>
    %9 = vector.shape_cast %8 : vector<1x8x128xf32> to vector<8x128xf32>
    %c2 = arith.constant 2 : index
    %c0_3 = arith.constant 0 : index
    %10 = arith.index_cast %3 : i32 to index
    %11 = vector.load %arg1[%c2, %c0_3, %10] : memref<13x8x128xf32, #tpu.memory_space<vmem>>, vector<1x8x128xf32>
    %12 = vector.shape_cast %11 : vector<1x8x128xf32> to vector<8x128xf32>
    %c3 = arith.constant 3 : index
    %c0_4 = arith.constant 0 : index
    %13 = arith.index_cast %3 : i32 to index
    %14 = vector.load %arg1[%c3, %c0_4, %13] : memref<13x8x128xf32, #tpu.memory_space<vmem>>, vector<1x8x128xf32>
    %15 = vector.shape_cast %14 : vector<1x8x128xf32> to vector<8x128xf32>
    %c4 = arith.constant 4 : index
    %c0_5 = arith.constant 0 : index
    %16 = arith.index_cast %3 : i32 to index
    %17 = vector.load %arg1[%c4, %c0_5, %16] : memref<13x8x128xf32, #tpu.memory_space<vmem>>, vector<1x8x128xf32>
    %18 = vector.shape_cast %17 : vector<1x8x128xf32> to vector<8x128xf32>
    %c5 = arith.constant 5 : index
    %c0_6 = arith.constant 0 : index
    %19 = arith.index_cast %3 : i32 to index
    %20 = vector.load %arg1[%c5, %c0_6, %19] : memref<13x8x128xf32, #tpu.memory_space<vmem>>, vector<1x8x128xf32>
    %21 = vector.shape_cast %20 : vector<1x8x128xf32> to vector<8x128xf32>
    %c6 = arith.constant 6 : index
    %c0_7 = arith.constant 0 : index
    %22 = arith.index_cast %3 : i32 to index
    %23 = vector.load %arg1[%c6, %c0_7, %22] : memref<13x8x128xf32, #tpu.memory_space<vmem>>, vector<1x8x128xf32>
    %24 = vector.shape_cast %23 : vector<1x8x128xf32> to vector<8x128xf32>
    %c7 = arith.constant 7 : index
    %c0_8 = arith.constant 0 : index
    %25 = arith.index_cast %3 : i32 to index
    %26 = vector.load %arg1[%c7, %c0_8, %25] : memref<13x8x128xf32, #tpu.memory_space<vmem>>, vector<1x8x128xf32>
    %27 = vector.shape_cast %26 : vector<1x8x128xf32> to vector<8x128xf32>
    %c8 = arith.constant 8 : index
    %c0_9 = arith.constant 0 : index
    %28 = arith.index_cast %3 : i32 to index
    %29 = vector.load %arg1[%c8, %c0_9, %28] : memref<13x8x128xf32, #tpu.memory_space<vmem>>, vector<1x8x128xf32>
    %30 = vector.shape_cast %29 : vector<1x8x128xf32> to vector<8x128xf32>
    %c9 = arith.constant 9 : index
    %c0_10 = arith.constant 0 : index
    %31 = arith.index_cast %3 : i32 to index
    %32 = vector.load %arg1[%c9, %c0_10, %31] : memref<13x8x128xf32, #tpu.memory_space<vmem>>, vector<1x8x128xf32>
    %33 = vector.shape_cast %32 : vector<1x8x128xf32> to vector<8x128xf32>
    %c10 = arith.constant 10 : index
    %c0_11 = arith.constant 0 : index
    %34 = arith.index_cast %3 : i32 to index
    %35 = vector.load %arg1[%c10, %c0_11, %34] : memref<13x8x128xf32, #tpu.memory_space<vmem>>, vector<1x8x128xf32>
    %36 = vector.shape_cast %35 : vector<1x8x128xf32> to vector<8x128xf32>
    %c11 = arith.constant 11 : index
    %c0_12 = arith.constant 0 : index
    %37 = arith.index_cast %3 : i32 to index
    %38 = vector.load %arg1[%c11, %c0_12, %37] : memref<13x8x128xf32, #tpu.memory_space<vmem>>, vector<1x8x128xf32>
    %39 = vector.shape_cast %38 : vector<1x8x128xf32> to vector<8x128xf32>
    %c12 = arith.constant 12 : index
    %c0_13 = arith.constant 0 : index
    %40 = arith.index_cast %3 : i32 to index
    %41 = vector.load %arg1[%c12, %c0_13, %40] : memref<13x8x128xf32, #tpu.memory_space<vmem>>, vector<1x8x128xf32>
    %42 = vector.shape_cast %41 : vector<1x8x128xf32> to vector<8x128xf32>
    %c0_14 = arith.constant 0 : index
    %c0_15 = arith.constant 0 : index
    %43 = arith.index_cast %3 : i32 to index
    %44 = vector.load %arg2[%c0_14, %c0_15, %43] : memref<13x8x128xf32, #tpu.memory_space<vmem>>, vector<1x8x128xf32>
    %45 = vector.shape_cast %44 : vector<1x8x128xf32> to vector<8x128xf32>
    %c1_16 = arith.constant 1 : index
    %c0_17 = arith.constant 0 : index
    %46 = arith.index_cast %3 : i32 to index
    %47 = vector.load %arg2[%c1_16, %c0_17, %46] : memref<13x8x128xf32, #tpu.memory_space<vmem>>, vector<1x8x128xf32>
    %48 = vector.shape_cast %47 : vector<1x8x128xf32> to vector<8x128xf32>
    %c2_18 = arith.constant 2 : index
    %c0_19 = arith.constant 0 : index
    %49 = arith.index_cast %3 : i32 to index
    %50 = vector.load %arg2[%c2_18, %c0_19, %49] : memref<13x8x128xf32, #tpu.memory_space<vmem>>, vector<1x8x128xf32>
    %51 = vector.shape_cast %50 : vector<1x8x128xf32> to vector<8x128xf32>
    %c3_20 = arith.constant 3 : index
    %c0_21 = arith.constant 0 : index
    %52 = arith.index_cast %3 : i32 to index
    %53 = vector.load %arg2[%c3_20, %c0_21, %52] : memref<13x8x128xf32, #tpu.memory_space<vmem>>, vector<1x8x128xf32>
    %54 = vector.shape_cast %53 : vector<1x8x128xf32> to vector<8x128xf32>
    %c4_22 = arith.constant 4 : index
    %c0_23 = arith.constant 0 : index
    %55 = arith.index_cast %3 : i32 to index
    %56 = vector.load %arg2[%c4_22, %c0_23, %55] : memref<13x8x128xf32, #tpu.memory_space<vmem>>, vector<1x8x128xf32>
    %57 = vector.shape_cast %56 : vector<1x8x128xf32> to vector<8x128xf32>
    %c5_24 = arith.constant 5 : index
    %c0_25 = arith.constant 0 : index
    %58 = arith.index_cast %3 : i32 to index
    %59 = vector.load %arg2[%c5_24, %c0_25, %58] : memref<13x8x128xf32, #tpu.memory_space<vmem>>, vector<1x8x128xf32>
    %60 = vector.shape_cast %59 : vector<1x8x128xf32> to vector<8x128xf32>
    %c6_26 = arith.constant 6 : index
    %c0_27 = arith.constant 0 : index
    %61 = arith.index_cast %3 : i32 to index
    %62 = vector.load %arg2[%c6_26, %c0_27, %61] : memref<13x8x128xf32, #tpu.memory_space<vmem>>, vector<1x8x128xf32>
    %63 = vector.shape_cast %62 : vector<1x8x128xf32> to vector<8x128xf32>
    %c7_28 = arith.constant 7 : index
    %c0_29 = arith.constant 0 : index
    %64 = arith.index_cast %3 : i32 to index
    %65 = vector.load %arg2[%c7_28, %c0_29, %64] : memref<13x8x128xf32, #tpu.memory_space<vmem>>, vector<1x8x128xf32>
    %66 = vector.shape_cast %65 : vector<1x8x128xf32> to vector<8x128xf32>
    %c8_30 = arith.constant 8 : index
    %c0_31 = arith.constant 0 : index
    %67 = arith.index_cast %3 : i32 to index
    %68 = vector.load %arg2[%c8_30, %c0_31, %67] : memref<13x8x128xf32, #tpu.memory_space<vmem>>, vector<1x8x128xf32>
    %69 = vector.shape_cast %68 : vector<1x8x128xf32> to vector<8x128xf32>
    %c9_32 = arith.constant 9 : index
    %c0_33 = arith.constant 0 : index
    %70 = arith.index_cast %3 : i32 to index
    %71 = vector.load %arg2[%c9_32, %c0_33, %70] : memref<13x8x128xf32, #tpu.memory_space<vmem>>, vector<1x8x128xf32>
    %72 = vector.shape_cast %71 : vector<1x8x128xf32> to vector<8x128xf32>
    %c10_34 = arith.constant 10 : index
    %c0_35 = arith.constant 0 : index
    %73 = arith.index_cast %3 : i32 to index
    %74 = vector.load %arg2[%c10_34, %c0_35, %73] : memref<13x8x128xf32, #tpu.memory_space<vmem>>, vector<1x8x128xf32>
    %75 = vector.shape_cast %74 : vector<1x8x128xf32> to vector<8x128xf32>
    %c11_36 = arith.constant 11 : index
    %c0_37 = arith.constant 0 : index
    %76 = arith.index_cast %3 : i32 to index
    %77 = vector.load %arg2[%c11_36, %c0_37, %76] : memref<13x8x128xf32, #tpu.memory_space<vmem>>, vector<1x8x128xf32>
    %78 = vector.shape_cast %77 : vector<1x8x128xf32> to vector<8x128xf32>
    %c12_38 = arith.constant 12 : index
    %c0_39 = arith.constant 0 : index
    %79 = arith.index_cast %3 : i32 to index
    %80 = vector.load %arg2[%c12_38, %c0_39, %79] : memref<13x8x128xf32, #tpu.memory_space<vmem>>, vector<1x8x128xf32>
    %81 = vector.shape_cast %80 : vector<1x8x128xf32> to vector<8x128xf32>
    %82 = arith.mulf %6, %45 : vector<8x128xf32>
    %83 = arith.mulf %9, %48 : vector<8x128xf32>
    %84 = arith.addf %82, %83 : vector<8x128xf32>
    %85 = arith.mulf %12, %51 : vector<8x128xf32>
    %86 = arith.addf %84, %85 : vector<8x128xf32>
    %87 = arith.mulf %15, %54 : vector<8x128xf32>
    %88 = arith.addf %86, %87 : vector<8x128xf32>
    %89 = arith.mulf %18, %57 : vector<8x128xf32>
    %90 = arith.addf %88, %89 : vector<8x128xf32>
    %91 = arith.mulf %21, %60 : vector<8x128xf32>
    %92 = arith.addf %90, %91 : vector<8x128xf32>
    %93 = arith.mulf %24, %63 : vector<8x128xf32>
    %94 = arith.addf %92, %93 : vector<8x128xf32>
    %95 = arith.mulf %27, %66 : vector<8x128xf32>
    %96 = arith.addf %94, %95 : vector<8x128xf32>
    %97 = arith.mulf %30, %69 : vector<8x128xf32>
    %98 = arith.addf %96, %97 : vector<8x128xf32>
    %99 = arith.mulf %33, %72 : vector<8x128xf32>
    %100 = arith.addf %98, %99 : vector<8x128xf32>
    %101 = arith.mulf %36, %75 : vector<8x128xf32>
    %102 = arith.addf %100, %101 : vector<8x128xf32>
    %103 = arith.mulf %39, %78 : vector<8x128xf32>
    %104 = arith.addf %102, %103 : vector<8x128xf32>
    %105 = arith.mulf %42, %81 : vector<8x128xf32>
    %106 = arith.addf %104, %105 : vector<8x128xf32>
    %c0_40 = arith.constant 0 : index
    %c0_41 = arith.constant 0 : index
    %107 = arith.index_cast %3 : i32 to index
    %108 = vector.load %arg3[%c0_40, %c0_41, %107] : memref<13x8x128xf32, #tpu.memory_space<vmem>>, vector<1x8x128xf32>
    %109 = vector.shape_cast %108 : vector<1x8x128xf32> to vector<8x128xf32>
    %110 = vector.shape_cast %106 : vector<8x128xf32> to vector<1x8x128xf32>
    tpu.vector_store %arg3[%c0_40, %c0_41, %107], %110 {strides = array<i32>} : memref<13x8x128xf32, #tpu.memory_space<vmem>>, vector<1x8x128xf32>,
    %111 = arith.mulf %6, %48 : vector<8x128xf32>
    %112 = arith.mulf %9, %45 : vector<8x128xf32>
    %113 = arith.addf %111, %112 : vector<8x128xf32>
    %114 = arith.mulf %9, %57 : vector<8x128xf32>
    %115 = arith.addf %113, %114 : vector<8x128xf32>
    %116 = arith.mulf %18, %48 : vector<8x128xf32>
    %117 = arith.addf %115, %116 : vector<8x128xf32>
    %118 = arith.mulf %12, %66 : vector<8x128xf32>
    %119 = arith.addf %117, %118 : vector<8x128xf32>
    %120 = arith.mulf %21, %51 : vector<8x128xf32>
    %121 = arith.addf %119, %120 : vector<8x128xf32>
    %122 = arith.mulf %15, %75 : vector<8x128xf32>
    %123 = arith.addf %121, %122 : vector<8x128xf32>
    %124 = arith.mulf %24, %54 : vector<8x128xf32>
    %125 = arith.addf %123, %124 : vector<8x128xf32>
    %c1_42 = arith.constant 1 : index
    %c0_43 = arith.constant 0 : index
    %126 = arith.index_cast %3 : i32 to index
    %127 = vector.load %arg3[%c1_42, %c0_43, %126] : memref<13x8x128xf32, #tpu.memory_space<vmem>>, vector<1x8x128xf32>
    %128 = vector.shape_cast %127 : vector<1x8x128xf32> to vector<8x128xf32>
    %129 = vector.shape_cast %125 : vector<8x128xf32> to vector<1x8x128xf32>
    tpu.vector_store %arg3[%c1_42, %c0_43, %126], %129 {strides = array<i32>} : memref<13x8x128xf32, #tpu.memory_space<vmem>>, vector<1x8x128xf32>,
    %130 = arith.mulf %6, %51 : vector<8x128xf32>
    %131 = arith.mulf %12, %45 : vector<8x128xf32>
    %132 = arith.addf %130, %131 : vector<8x128xf32>
    %133 = arith.mulf %9, %60 : vector<8x128xf32>
    %134 = arith.addf %132, %133 : vector<8x128xf32>
    %135 = arith.mulf %27, %48 : vector<8x128xf32>
    %136 = arith.addf %134, %135 : vector<8x128xf32>
    %137 = arith.mulf %12, %69 : vector<8x128xf32>
    %138 = arith.addf %136, %137 : vector<8x128xf32>
    %139 = arith.mulf %30, %51 : vector<8x128xf32>
    %140 = arith.addf %138, %139 : vector<8x128xf32>
    %141 = arith.mulf %15, %78 : vector<8x128xf32>
    %142 = arith.addf %140, %141 : vector<8x128xf32>
    %143 = arith.mulf %33, %54 : vector<8x128xf32>
    %144 = arith.addf %142, %143 : vector<8x128xf32>
    %c2_44 = arith.constant 2 : index
    %c0_45 = arith.constant 0 : index
    %145 = arith.index_cast %3 : i32 to index
    %146 = vector.load %arg3[%c2_44, %c0_45, %145] : memref<13x8x128xf32, #tpu.memory_space<vmem>>, vector<1x8x128xf32>
    %147 = vector.shape_cast %146 : vector<1x8x128xf32> to vector<8x128xf32>
    %148 = vector.shape_cast %144 : vector<8x128xf32> to vector<1x8x128xf32>
    tpu.vector_store %arg3[%c2_44, %c0_45, %145], %148 {strides = array<i32>} : memref<13x8x128xf32, #tpu.memory_space<vmem>>, vector<1x8x128xf32>,
    %149 = arith.mulf %6, %54 : vector<8x128xf32>
    %150 = arith.mulf %15, %45 : vector<8x128xf32>
    %151 = arith.addf %149, %150 : vector<8x128xf32>
    %152 = arith.mulf %9, %63 : vector<8x128xf32>
    %153 = arith.addf %151, %152 : vector<8x128xf32>
    %154 = arith.mulf %36, %48 : vector<8x128xf32>
    %155 = arith.addf %153, %154 : vector<8x128xf32>
    %156 = arith.mulf %12, %72 : vector<8x128xf32>
    %157 = arith.addf %155, %156 : vector<8x128xf32>
    %158 = arith.mulf %39, %51 : vector<8x128xf32>
    %159 = arith.addf %157, %158 : vector<8x128xf32>
    %160 = arith.mulf %15, %81 : vector<8x128xf32>
    %161 = arith.addf %159, %160 : vector<8x128xf32>
    %162 = arith.mulf %42, %54 : vector<8x128xf32>
    %163 = arith.addf %161, %162 : vector<8x128xf32>
    %c3_46 = arith.constant 3 : index
    %c0_47 = arith.constant 0 : index
    %164 = arith.index_cast %3 : i32 to index
    %165 = vector.load %arg3[%c3_46, %c0_47, %164] : memref<13x8x128xf32, #tpu.memory_space<vmem>>, vector<1x8x128xf32>
    %166 = vector.shape_cast %165 : vector<1x8x128xf32> to vector<8x128xf32>
    %167 = vector.shape_cast %163 : vector<8x128xf32> to vector<1x8x128xf32>
    tpu.vector_store %arg3[%c3_46, %c0_47, %164], %167 {strides = array<i32>} : memref<13x8x128xf32, #tpu.memory_space<vmem>>, vector<1x8x128xf32>,
    %168 = arith.mulf %6, %57 : vector<8x128xf32>
    %169 = arith.mulf %9, %48 : vector<8x128xf32>
    %170 = arith.addf %168, %169 : vector<8x128xf32>
    %171 = arith.mulf %18, %45 : vector<8x128xf32>
    %172 = arith.addf %170, %171 : vector<8x128xf32>
    %173 = arith.mulf %18, %57 : vector<8x128xf32>
    %174 = arith.addf %172, %173 : vector<8x128xf32>
    %175 = arith.mulf %21, %66 : vector<8x128xf32>
    %176 = arith.addf %174, %175 : vector<8x128xf32>
    %177 = arith.mulf %24, %75 : vector<8x128xf32>
    %178 = arith.addf %176, %177 : vector<8x128xf32>
    %c4_48 = arith.constant 4 : index
    %c0_49 = arith.constant 0 : index
    %179 = arith.index_cast %3 : i32 to index
    %180 = vector.load %arg3[%c4_48, %c0_49, %179] : memref<13x8x128xf32, #tpu.memory_space<vmem>>, vector<1x8x128xf32>
    %181 = vector.shape_cast %180 : vector<1x8x128xf32> to vector<8x128xf32>
    %182 = vector.shape_cast %178 : vector<8x128xf32> to vector<1x8x128xf32>
    tpu.vector_store %arg3[%c4_48, %c0_49, %179], %182 {strides = array<i32>} : memref<13x8x128xf32, #tpu.memory_space<vmem>>, vector<1x8x128xf32>,
    %183 = arith.mulf %6, %60 : vector<8x128xf32>
    %184 = arith.mulf %9, %51 : vector<8x128xf32>
    %185 = arith.addf %183, %184 : vector<8x128xf32>
    %186 = arith.mulf %21, %45 : vector<8x128xf32>
    %187 = arith.addf %185, %186 : vector<8x128xf32>
    %188 = arith.mulf %18, %60 : vector<8x128xf32>
    %189 = arith.addf %187, %188 : vector<8x128xf32>
    %190 = arith.mulf %21, %69 : vector<8x128xf32>
    %191 = arith.addf %189, %190 : vector<8x128xf32>
    %192 = arith.mulf %24, %78 : vector<8x128xf32>
    %193 = arith.addf %191, %192 : vector<8x128xf32>
    %c5_50 = arith.constant 5 : index
    %c0_51 = arith.constant 0 : index
    %194 = arith.index_cast %3 : i32 to index
    %195 = vector.load %arg3[%c5_50, %c0_51, %194] : memref<13x8x128xf32, #tpu.memory_space<vmem>>, vector<1x8x128xf32>
    %196 = vector.shape_cast %195 : vector<1x8x128xf32> to vector<8x128xf32>
    %197 = vector.shape_cast %193 : vector<8x128xf32> to vector<1x8x128xf32>
    tpu.vector_store %arg3[%c5_50, %c0_51, %194], %197 {strides = array<i32>} : memref<13x8x128xf32, #tpu.memory_space<vmem>>, vector<1x8x128xf32>,
    %198 = arith.mulf %6, %63 : vector<8x128xf32>
    %199 = arith.mulf %9, %54 : vector<8x128xf32>
    %200 = arith.addf %198, %199 : vector<8x128xf32>
    %201 = arith.mulf %24, %45 : vector<8x128xf32>
    %202 = arith.addf %200, %201 : vector<8x128xf32>
    %203 = arith.mulf %18, %63 : vector<8x128xf32>
    %204 = arith.addf %202, %203 : vector<8x128xf32>
    %205 = arith.mulf %21, %72 : vector<8x128xf32>
    %206 = arith.addf %204, %205 : vector<8x128xf32>
    %207 = arith.mulf %24, %81 : vector<8x128xf32>
    %208 = arith.addf %206, %207 : vector<8x128xf32>
    %c6_52 = arith.constant 6 : index
    %c0_53 = arith.constant 0 : index
    %209 = arith.index_cast %3 : i32 to index
    %210 = vector.load %arg3[%c6_52, %c0_53, %209] : memref<13x8x128xf32, #tpu.memory_space<vmem>>, vector<1x8x128xf32>
    %211 = vector.shape_cast %210 : vector<1x8x128xf32> to vector<8x128xf32>
    %212 = vector.shape_cast %208 : vector<8x128xf32> to vector<1x8x128xf32>
    tpu.vector_store %arg3[%c6_52, %c0_53, %209], %212 {strides = array<i32>} : memref<13x8x128xf32, #tpu.memory_space<vmem>>, vector<1x8x128xf32>,
    %213 = arith.mulf %6, %66 : vector<8x128xf32>
    %214 = arith.mulf %12, %48 : vector<8x128xf32>
    %215 = arith.addf %213, %214 : vector<8x128xf32>
    %216 = arith.mulf %27, %45 : vector<8x128xf32>
    %217 = arith.addf %215, %216 : vector<8x128xf32>
    %218 = arith.mulf %27, %57 : vector<8x128xf32>
    %219 = arith.addf %217, %218 : vector<8x128xf32>
    %220 = arith.mulf %30, %66 : vector<8x128xf32>
    %221 = arith.addf %219, %220 : vector<8x128xf32>
    %222 = arith.mulf %33, %75 : vector<8x128xf32>
    %223 = arith.addf %221, %222 : vector<8x128xf32>
    %c7_54 = arith.constant 7 : index
    %c0_55 = arith.constant 0 : index
    %224 = arith.index_cast %3 : i32 to index
    %225 = vector.load %arg3[%c7_54, %c0_55, %224] : memref<13x8x128xf32, #tpu.memory_space<vmem>>, vector<1x8x128xf32>
    %226 = vector.shape_cast %225 : vector<1x8x128xf32> to vector<8x128xf32>
    %227 = vector.shape_cast %223 : vector<8x128xf32> to vector<1x8x128xf32>
    tpu.vector_store %arg3[%c7_54, %c0_55, %224], %227 {strides = array<i32>} : memref<13x8x128xf32, #tpu.memory_space<vmem>>, vector<1x8x128xf32>,
    %228 = arith.mulf %6, %69 : vector<8x128xf32>
    %229 = arith.mulf %12, %51 : vector<8x128xf32>
    %230 = arith.addf %228, %229 : vector<8x128xf32>
    %231 = arith.mulf %30, %45 : vector<8x128xf32>
    %232 = arith.addf %230, %231 : vector<8x128xf32>
    %233 = arith.mulf %27, %60 : vector<8x128xf32>
    %234 = arith.addf %232, %233 : vector<8x128xf32>
    %235 = arith.mulf %30, %69 : vector<8x128xf32>
    %236 = arith.addf %234, %235 : vector<8x128xf32>
    %237 = arith.mulf %33, %78 : vector<8x128xf32>
    %238 = arith.addf %236, %237 : vector<8x128xf32>
    %c8_56 = arith.constant 8 : index
    %c0_57 = arith.constant 0 : index
    %239 = arith.index_cast %3 : i32 to index
    %240 = vector.load %arg3[%c8_56, %c0_57, %239] : memref<13x8x128xf32, #tpu.memory_space<vmem>>, vector<1x8x128xf32>
    %241 = vector.shape_cast %240 : vector<1x8x128xf32> to vector<8x128xf32>
    %242 = vector.shape_cast %238 : vector<8x128xf32> to vector<1x8x128xf32>
    tpu.vector_store %arg3[%c8_56, %c0_57, %239], %242 {strides = array<i32>} : memref<13x8x128xf32, #tpu.memory_space<vmem>>, vector<1x8x128xf32>,
    %243 = arith.mulf %6, %72 : vector<8x128xf32>
    %244 = arith.mulf %12, %54 : vector<8x128xf32>
    %245 = arith.addf %243, %244 : vector<8x128xf32>
    %246 = arith.mulf %33, %45 : vector<8x128xf32>
    %247 = arith.addf %245, %246 : vector<8x128xf32>
    %248 = arith.mulf %27, %63 : vector<8x128xf32>
    %249 = arith.addf %247, %248 : vector<8x128xf32>
    %250 = arith.mulf %30, %72 : vector<8x128xf32>
    %251 = arith.addf %249, %250 : vector<8x128xf32>
    %252 = arith.mulf %33, %81 : vector<8x128xf32>
    %253 = arith.addf %251, %252 : vector<8x128xf32>
    %c9_58 = arith.constant 9 : index
    %c0_59 = arith.constant 0 : index
    %254 = arith.index_cast %3 : i32 to index
    %255 = vector.load %arg3[%c9_58, %c0_59, %254] : memref<13x8x128xf32, #tpu.memory_space<vmem>>, vector<1x8x128xf32>
    %256 = vector.shape_cast %255 : vector<1x8x128xf32> to vector<8x128xf32>
    %257 = vector.shape_cast %253 : vector<8x128xf32> to vector<1x8x128xf32>
    tpu.vector_store %arg3[%c9_58, %c0_59, %254], %257 {strides = array<i32>} : memref<13x8x128xf32, #tpu.memory_space<vmem>>, vector<1x8x128xf32>,
    %258 = arith.mulf %6, %75 : vector<8x128xf32>
    %259 = arith.mulf %15, %48 : vector<8x128xf32>
    %260 = arith.addf %258, %259 : vector<8x128xf32>
    %261 = arith.mulf %36, %45 : vector<8x128xf32>
    %262 = arith.addf %260, %261 : vector<8x128xf32>
    %263 = arith.mulf %36, %57 : vector<8x128xf32>
    %264 = arith.addf %262, %263 : vector<8x128xf32>
    %265 = arith.mulf %39, %66 : vector<8x128xf32>
    %266 = arith.addf %264, %265 : vector<8x128xf32>
    %267 = arith.mulf %42, %75 : vector<8x128xf32>
    %268 = arith.addf %266, %267 : vector<8x128xf32>
    %c10_60 = arith.constant 10 : index
    %c0_61 = arith.constant 0 : index
    %269 = arith.index_cast %3 : i32 to index
    %270 = vector.load %arg3[%c10_60, %c0_61, %269] : memref<13x8x128xf32, #tpu.memory_space<vmem>>, vector<1x8x128xf32>
    %271 = vector.shape_cast %270 : vector<1x8x128xf32> to vector<8x128xf32>
    %272 = vector.shape_cast %268 : vector<8x128xf32> to vector<1x8x128xf32>
    tpu.vector_store %arg3[%c10_60, %c0_61, %269], %272 {strides = array<i32>} : memref<13x8x128xf32, #tpu.memory_space<vmem>>, vector<1x8x128xf32>,
    %273 = arith.mulf %6, %78 : vector<8x128xf32>
    %274 = arith.mulf %15, %51 : vector<8x128xf32>
    %275 = arith.addf %273, %274 : vector<8x128xf32>
    %276 = arith.mulf %39, %45 : vector<8x128xf32>
    %277 = arith.addf %275, %276 : vector<8x128xf32>
    %278 = arith.mulf %36, %60 : vector<8x128xf32>
    %279 = arith.addf %277, %278 : vector<8x128xf32>
    %280 = arith.mulf %39, %69 : vector<8x128xf32>
    %281 = arith.addf %279, %280 : vector<8x128xf32>
    %282 = arith.mulf %42, %78 : vector<8x128xf32>
    %283 = arith.addf %281, %282 : vector<8x128xf32>
    %c11_62 = arith.constant 11 : index
    %c0_63 = arith.constant 0 : index
    %284 = arith.index_cast %3 : i32 to index
    %285 = vector.load %arg3[%c11_62, %c0_63, %284] : memref<13x8x128xf32, #tpu.memory_space<vmem>>, vector<1x8x128xf32>
    %286 = vector.shape_cast %285 : vector<1x8x128xf32> to vector<8x128xf32>
    %287 = vector.shape_cast %283 : vector<8x128xf32> to vector<1x8x128xf32>
    tpu.vector_store %arg3[%c11_62, %c0_63, %284], %287 {strides = array<i32>} : memref<13x8x128xf32, #tpu.memory_space<vmem>>, vector<1x8x128xf32>,
    %288 = arith.mulf %6, %81 : vector<8x128xf32>
    %289 = arith.mulf %15, %54 : vector<8x128xf32>
    %290 = arith.addf %288, %289 : vector<8x128xf32>
    %291 = arith.mulf %42, %45 : vector<8x128xf32>
    %292 = arith.addf %290, %291 : vector<8x128xf32>
    %293 = arith.mulf %36, %63 : vector<8x128xf32>
    %294 = arith.addf %292, %293 : vector<8x128xf32>
    %295 = arith.mulf %39, %72 : vector<8x128xf32>
    %296 = arith.addf %294, %295 : vector<8x128xf32>
    %297 = arith.mulf %42, %81 : vector<8x128xf32>
    %298 = arith.addf %296, %297 : vector<8x128xf32>
    %c12_64 = arith.constant 12 : index
    %c0_65 = arith.constant 0 : index
    %299 = arith.index_cast %3 : i32 to index
    %300 = vector.load %arg3[%c12_64, %c0_65, %299] : memref<13x8x128xf32, #tpu.memory_space<vmem>>, vector<1x8x128xf32>
    %301 = vector.shape_cast %300 : vector<1x8x128xf32> to vector<8x128xf32>
    %302 = vector.shape_cast %298 : vector<8x128xf32> to vector<1x8x128xf32>
    tpu.vector_store %arg3[%c12_64, %c0_65, %299], %302 {strides = array<i32>} : memref<13x8x128xf32, #tpu.memory_space<vmem>>, vector<1x8x128xf32>,
    %c1_i32_66 = arith.constant 1 : i32
    return
  }
  func.func @transform_0(%arg0: i32) -> (i32, i32, i32) {
    %c0_i32 = arith.constant 0 : i32
    %c0_i32_0 = arith.constant 0 : i32
    %c0_i32_1 = arith.constant 0 : i32
    return %c0_i32, %arg0, %c0_i32_0 : i32, i32, i32
  }
  func.func @transform_1(%arg0: i32) -> (i32, i32, i32) {
    %c0_i32 = arith.constant 0 : i32
    %c0_i32_0 = arith.constant 0 : i32
    %c0_i32_1 = arith.constant 0 : i32
    return %c0_i32, %arg0, %c0_i32_0 : i32, i32, i32
  }
  func.func @transform_2(%arg0: i32) -> (i32, i32, i32) {
    %c0_i32 = arith.constant 0 : i32
    %c0_i32_0 = arith.constant 0 : i32
    %c0_i32_1 = arith.constant 0 : i32
    return %c0_i32, %arg0, %c0_i32_0 : i32, i32, i32
  }
}

</mosaic_0001>

<llo_original>
// kernel: tpu_custom_call.1
$region0: #{tpu_custom_call.1}
  #allocation0 [shape = 'u32[]', space=smem, size = 0x4, offset = 0x4, fixed_abs, tag = 'smem constant byte address 0x4 - core index']
  #allocation1 [shape = 'u32[72,128]{1,0:T(1,128)}', space=vmem, size = 0x9000, scoped, tag = 'internal scratch']
  %s0 = inlined_call_operand.hbm [shape: f32[13,8,128], index: 0, kind: input, shape index: {}]
  %s1 = inlined_call_operand.hbm [shape: f32[13,8,128], index: 1, kind: input, shape index: {}]
  %s2 = inlined_call_operand.hbm [shape: f32[13,8,128], index: 2, kind: output, shape index: {}]
  %s3 = sld [smem:[#allocation0]]
  $region26: #{tpu_custom_call.1} parent=0
    _
  %s5 = ssub.s32 1, %s3
  %s6 = scalar_select 0, %s5, %s3
  $region1: #{tpu_custom_call.1} parent=0
    #allocation2 [shape = 'u8[53248]{0}', space=vmem, size = 0xd000, scoped, tag = 'input window, operand 0, single buffered']
    #allocation3 [shape = 's32[1]{0}', space=sflag, size = 0x4, scoped, tag = 'scoped memory for tpu_custom_call.1']
    #allocation4 [shape = 's32[1]{0}', space=sflag, size = 0x4, scoped, tag = 'scoped memory for tpu_custom_call.1']
    #allocation5 [shape = 'u8[53248]{0}', space=vmem, size = 0xd000, scoped, tag = 'input window, operand 1, single buffered']
    #allocation6 [shape = 's32[1]{0}', space=sflag, size = 0x4, scoped, tag = 'scoped memory for tpu_custom_call.1']
    #allocation7 [shape = 'u8[53248]{0}', space=vmem, size = 0xd000, scoped, tag = 'output window, operand 0, single buffered']
    %7 = vsyncpa [#allocation3], 0
    %8 = vsyncpa [#allocation6], 0
    %9 = vsyncpa [#allocation4], 0
    // Predicated region
    $region2: #{tpu_custom_call.1} parent=1 // pred_check
      _
    $region3: #{tpu_custom_call.1} parent=1 // pred_check_branch
      %11 = sbr.rel (0) target = $region5
    $region4: #{tpu_custom_call.1} parent=1 // pred_region
      %13 = vsyncadd [#allocation3], 0
      %s14 = sshll.u32 %s0, 4
      %s15 = int_to_ptr.hbm [resolvable:$true] %s14
      %s16 = sshll.u32 [#allocation2], 4
      %s17 = int_to_ptr.vmem [resolvable:$true] %s16
      %22 = dma.hbm_to_vmem [thread:$0]  %s15, 1664, %s17, [#allocation3], 128, 128, 8
    $region5: #{tpu_custom_call.1} parent=1 // pred_fallthru
      _
    // Predicated region
    $region6: #{tpu_custom_call.1} parent=1 // pred_check
      _
    $region7: #{tpu_custom_call.1} parent=1 // pred_check_branch
      %24 = sbr.rel (0) target = $region9
    $region8: #{tpu_custom_call.1} parent=1 // pred_region
      %26 = vsyncadd [#allocation6], 0
      %s27 = sshll.u32 %s1, 4
      %s28 = int_to_ptr.hbm [resolvable:$true] %s27
      %s29 = sshll.u32 [#allocation5], 4
      %s30 = int_to_ptr.vmem [resolvable:$true] %s29
      %35 = dma.hbm_to_vmem [thread:$0]  %s28, 1664, %s30, [#allocation6], 128, 128, 8
    $region9: #{tpu_custom_call.1} parent=1 // pred_fallthru
      _
    // Predicated region
    $region10: #{tpu_custom_call.1} parent=1 // pred_check
      _
    $region11: #{tpu_custom_call.1} parent=1 // pred_check_branch
      %37 = sbr.rel (0) target = $region13
    $region12: #{tpu_custom_call.1} parent=1 // pred_region
      %39 = dma.done [#allocation3], 1664
    $region13: #{tpu_custom_call.1} parent=1 // pred_fallthru
      _
    // Predicated region
    $region14: #{tpu_custom_call.1} parent=1 // pred_check
      _
    $region15: #{tpu_custom_call.1} parent=1 // pred_check_branch
      %41 = sbr.rel (0) target = $region17
    $region16: #{tpu_custom_call.1} parent=1 // pred_region
      %43 = dma.done [#allocation6], 1664
    $region17: #{tpu_custom_call.1} parent=1 // pred_fallthru
      _
    %v44 = vld [vmem:[#allocation2] sm:$0xff]
    %s45 = sadd.s32 0, 8
    %s46 = scalar_lea.vmem [#allocation2], %s45
    %v47 = vld [vmem:[%s46] sm:$0xff]
    %s48 = sadd.s32 0, 16
    %s49 = scalar_lea.vmem [#allocation2], %s48
    %v50 = vld [vmem:[%s49] sm:$0xff]
    %s51 = sadd.s32 0, 24
    %s52 = scalar_lea.vmem [#allocation2], %s51
    %v53 = vld [vmem:[%s52] sm:$0xff]
    %s54 = sadd.s32 0, 32
    %s55 = scalar_lea.vmem [#allocation2], %s54
    %v56 = vld [vmem:[%s55] sm:$0xff]
    %s57 = sadd.s32 0, 40
    %s58 = scalar_lea.vmem [#allocation2], %s57
    %v59 = vld [vmem:[%s58] sm:$0xff]
    %s60 = sadd.s32 0, 48
    %s61 = scalar_lea.vmem [#allocation2], %s60
    %v62 = vld [vmem:[%s61] sm:$0xff]
    %s63 = sadd.s32 0, 56
    %s64 = scalar_lea.vmem [#allocation2], %s63
    %v65 = vld [vmem:[%s64] sm:$0xff]
    %s66 = sadd.s32 0, 64
    %s67 = scalar_lea.vmem [#allocation2], %s66
    %v68 = vld [vmem:[%s67] sm:$0xff]
    %s69 = sadd.s32 0, 72
    %s70 = scalar_lea.vmem [#allocation2], %s69
    %v71 = vld [vmem:[%s70] sm:$0xff]
    %s72 = sadd.s32 0, 80
    %s73 = scalar_lea.vmem [#allocation2], %s72
    %v74 = vld [vmem:[%s73] sm:$0xff]
    %s75 = sadd.s32 0, 88
    %s76 = scalar_lea.vmem [#allocation2], %s75
    %v77 = vld [vmem:[%s76] sm:$0xff]
    %s78 = sadd.s32 0, 96
    %s79 = scalar_lea.vmem [#allocation2], %s78
    %v80 = vld [vmem:[%s79] sm:$0xff]
    %v81 = vld [vmem:[#allocation5] sm:$0xff]
    %s82 = scalar_lea.vmem [#allocation5], %s45
    %v83 = vld [vmem:[%s82] sm:$0xff]
    %s84 = scalar_lea.vmem [#allocation5], %s48
    %v85 = vld [vmem:[%s84] sm:$0xff]
    %s86 = scalar_lea.vmem [#allocation5], %s51
    %v87 = vld [vmem:[%s86] sm:$0xff]
    %s88 = scalar_lea.vmem [#allocation5], %s54
    %v89 = vld [vmem:[%s88] sm:$0xff]
    %s90 = scalar_lea.vmem [#allocation5], %s57
    %v91 = vld [vmem:[%s90] sm:$0xff]
    %s92 = scalar_lea.vmem [#allocation5], %s60
    %v93 = vld [vmem:[%s92] sm:$0xff]
    %s94 = scalar_lea.vmem [#allocation5], %s63
    %v95 = vld [vmem:[%s94] sm:$0xff]
    %s96 = scalar_lea.vmem [#allocation5], %s66
    %v97 = vld [vmem:[%s96] sm:$0xff]
    %s98 = scalar_lea.vmem [#allocation5], %s69
    %v99 = vld [vmem:[%s98] sm:$0xff]
    %s100 = scalar_lea.vmem [#allocation5], %s72
    %v101 = vld [vmem:[%s100] sm:$0xff]
    %s102 = scalar_lea.vmem [#allocation5], %s75
    %v103 = vld [vmem:[%s102] sm:$0xff]
    %s104 = scalar_lea.vmem [#allocation5], %s78
    %v105 = vld [vmem:[%s104] sm:$0xff]
    %v106 = vmul.f32 %v44, %v81
    %v107 = vmul.f32 %v47, %v83
    %v108 = vadd.f32 %v106, %v107
    %v109 = vmul.f32 %v50, %v85
    %v110 = vadd.f32 %v108, %v109
    %v111 = vmul.f32 %v53, %v87
    %v112 = vadd.f32 %v110, %v111
    %v113 = vmul.f32 %v56, %v89
    %v114 = vadd.f32 %v112, %v113
    %v115 = vmul.f32 %v59, %v91
    %v116 = vadd.f32 %v114, %v115
    %v117 = vmul.f32 %v62, %v93
    %v118 = vadd.f32 %v116, %v117
    %v119 = vmul.f32 %v65, %v95
    %v120 = vadd.f32 %v118, %v119
    %v121 = vmul.f32 %v68, %v97
    %v122 = vadd.f32 %v120, %v121
    %v123 = vmul.f32 %v71, %v99
    %v124 = vadd.f32 %v122, %v123
    %v125 = vmul.f32 %v74, %v101
    %v126 = vadd.f32 %v124, %v125
    %v127 = vmul.f32 %v77, %v103
    %v128 = vadd.f32 %v126, %v127
    %v129 = vmul.f32 %v80, %v105
    %v130 = vadd.f32 %v128, %v129
    %131 = vst [vmem:[#allocation7] sm:$0xff] %v130
    %v132 = vmul.f32 %v44, %v83
    %v133 = vmul.f32 %v47, %v81
    %v134 = vadd.f32 %v132, %v133
    %v135 = vmul.f32 %v47, %v89
    %v136 = vadd.f32 %v134, %v135
    %v137 = vmul.f32 %v56, %v83
    %v138 = vadd.f32 %v136, %v137
    %v139 = vmul.f32 %v50, %v95
    %v140 = vadd.f32 %v138, %v139
    %v141 = vmul.f32 %v59, %v85
    %v142 = vadd.f32 %v140, %v141
    %v143 = vmul.f32 %v53, %v101
    %v144 = vadd.f32 %v142, %v143
    %v145 = vmul.f32 %v62, %v87
    %v146 = vadd.f32 %v144, %v145
    %s147 = scalar_lea.vmem [#allocation7], %s45
    %148 = vst [vmem:[%s147] sm:$0xff] %v146
    %v149 = vmul.f32 %v44, %v85
    %v150 = vmul.f32 %v50, %v81
    %v151 = vadd.f32 %v149, %v150
    %v152 = vmul.f32 %v47, %v91
    %v153 = vadd.f32 %v151, %v152
    %v154 = vmul.f32 %v65, %v83
    %v155 = vadd.f32 %v153, %v154
    %v156 = vmul.f32 %v50, %v97
    %v157 = vadd.f32 %v155, %v156
    %v158 = vmul.f32 %v68, %v85
    %v159 = vadd.f32 %v157, %v158
    %v160 = vmul.f32 %v53, %v103
    %v161 = vadd.f32 %v159, %v160
    %v162 = vmul.f32 %v71, %v87
    %v163 = vadd.f32 %v161, %v162
    %s164 = scalar_lea.vmem [#allocation7], %s48
    %165 = vst [vmem:[%s164] sm:$0xff] %v163
    %v166 = vmul.f32 %v44, %v87
    %v167 = vmul.f32 %v53, %v81
    %v168 = vadd.f32 %v166, %v167
    %v169 = vmul.f32 %v47, %v93
    %v170 = vadd.f32 %v168, %v169
    %v171 = vmul.f32 %v74, %v83
    %v172 = vadd.f32 %v170, %v171
    %v173 = vmul.f32 %v50, %v99
    %v174 = vadd.f32 %v172, %v173
    %v175 = vmul.f32 %v77, %v85
    %v176 = vadd.f32 %v174, %v175
    %v177 = vmul.f32 %v53, %v105
    %v178 = vadd.f32 %v176, %v177
    %v179 = vmul.f32 %v80, %v87
    %v180 = vadd.f32 %v178, %v179
    %s181 = scalar_lea.vmem [#allocation7], %s51
    %182 = vst [vmem:[%s181] sm:$0xff] %v180
    %v183 = vmul.f32 %v44, %v89
    %v184 = vadd.f32 %v183, %v107
    %v185 = vmul.f32 %v56, %v81
    %v186 = vadd.f32 %v184, %v185
    %v187 = vadd.f32 %v186, %v113
    %v188 = vmul.f32 %v59, %v95
    %v189 = vadd.f32 %v187, %v188
    %v190 = vmul.f32 %v62, %v101
    %v191 = vadd.f32 %v189, %v190
    %s192 = scalar_lea.vmem [#allocation7], %s54
    %193 = vst [vmem:[%s192] sm:$0xff] %v191
    %v194 = vmul.f32 %v44, %v91
    %v195 = vmul.f32 %v47, %v85
    %v196 = vadd.f32 %v194, %v195
    %v197 = vmul.f32 %v59, %v81
    %v198 = vadd.f32 %v196, %v197
    %v199 = vmul.f32 %v56, %v91
    %v200 = vadd.f32 %v198, %v199
    %v201 = vmul.f32 %v59, %v97
    %v202 = vadd.f32 %v200, %v201
    %v203 = vmul.f32 %v62, %v103
    %v204 = vadd.f32 %v202, %v203
    %s205 = scalar_lea.vmem [#allocation7], %s57
    %206 = vst [vmem:[%s205] sm:$0xff] %v204
    %v207 = vmul.f32 %v44, %v93
    %v208 = vmul.f32 %v47, %v87
    %v209 = vadd.f32 %v207, %v208
    %v210 = vmul.f32 %v62, %v81
    %v211 = vadd.f32 %v209, %v210
    %v212 = vmul.f32 %v56, %v93
    %v213 = vadd.f32 %v211, %v212
    %v214 = vmul.f32 %v59, %v99
    %v215 = vadd.f32 %v213, %v214
    %v216 = vmul.f32 %v62, %v105
    %v217 = vadd.f32 %v215, %v216
    %s218 = scalar_lea.vmem [#allocation7], %s60
    %219 = vst [vmem:[%s218] sm:$0xff] %v217
    %v220 = vmul.f32 %v44, %v95
    %v221 = vmul.f32 %v50, %v83
    %v222 = vadd.f32 %v220, %v221
    %v223 = vmul.f32 %v65, %v81
    %v224 = vadd.f32 %v222, %v223
    %v225 = vmul.f32 %v65, %v89
    %v226 = vadd.f32 %v224, %v225
    %v227 = vmul.f32 %v68, %v95
    %v228 = vadd.f32 %v226, %v227
    %v229 = vmul.f32 %v71, %v101
    %v230 = vadd.f32 %v228, %v229
    %s231 = scalar_lea.vmem [#allocation7], %s63
    %232 = vst [vmem:[%s231] sm:$0xff] %v230
    %v233 = vmul.f32 %v44, %v97
    %v234 = vadd.f32 %v233, %v109
    %v235 = vmul.f32 %v68, %v81
    %v236 = vadd.f32 %v234, %v235
    %v237 = vmul.f32 %v65, %v91
    %v238 = vadd.f32 %v236, %v237
    %v239 = vadd.f32 %v238, %v121
    %v240 = vmul.f32 %v71, %v103
    %v241 = vadd.f32 %v239, %v240
    %s242 = scalar_lea.vmem [#allocation7], %s66
    %243 = vst [vmem:[%s242] sm:$0xff] %v241
    %v244 = vmul.f32 %v44, %v99
    %v245 = vmul.f32 %v50, %v87
    %v246 = vadd.f32 %v244, %v245
    %v247 = vmul.f32 %v71, %v81
    %v248 = vadd.f32 %v246, %v247
    %v249 = vmul.f32 %v65, %v93
    %v250 = vadd.f32 %v248, %v249
    %v251 = vmul.f32 %v68, %v99
    %v252 = vadd.f32 %v250, %v251
    %v253 = vmul.f32 %v71, %v105
    %v254 = vadd.f32 %v252, %v253
    %s255 = scalar_lea.vmem [#allocation7], %s69
    %256 = vst [vmem:[%s255] sm:$0xff] %v254
    %v257 = vmul.f32 %v44, %v101
    %v258 = vmul.f32 %v53, %v83
    %v259 = vadd.f32 %v257, %v258
    %v260 = vmul.f32 %v74, %v81
    %v261 = vadd.f32 %v259, %v260
    %v262 = vmul.f32 %v74, %v89
    %v263 = vadd.f32 %v261, %v262
    %v264 = vmul.f32 %v77, %v95
    %v265 = vadd.f32 %v263, %v264
    %v266 = vmul.f32 %v80, %v101
    %v267 = vadd.f32 %v265, %v266
    %s268 = scalar_lea.vmem [#allocation7], %s72
    %269 = vst [vmem:[%s268] sm:$0xff] %v267
    %v270 = vmul.f32 %v44, %v103
    %v271 = vmul.f32 %v53, %v85
    %v272 = vadd.f32 %v270, %v271
    %v273 = vmul.f32 %v77, %v81
    %v274 = vadd.f32 %v272, %v273
    %v275 = vmul.f32 %v74, %v91
    %v276 = vadd.f32 %v274, %v275
    %v277 = vmul.f32 %v77, %v97
    %v278 = vadd.f32 %v276, %v277
    %v279 = vmul.f32 %v80, %v103
    %v280 = vadd.f32 %v278, %v279
    %s281 = scalar_lea.vmem [#allocation7], %s75
    %282 = vst [vmem:[%s281] sm:$0xff] %v280
    %v283 = vmul.f32 %v44, %v105
    %v284 = vadd.f32 %v283, %v111
    %v285 = vmul.f32 %v80, %v81
    %v286 = vadd.f32 %v284, %v285
    %v287 = vmul.f32 %v74, %v93
    %v288 = vadd.f32 %v286, %v287
    %v289 = vmul.f32 %v77, %v99
    %v290 = vadd.f32 %v288, %v289
    %v291 = vadd.f32 %v290, %v129
    %s292 = scalar_lea.vmem [#allocation7], %s78
    %293 = vst [vmem:[%s292] sm:$0xff] %v291
    // Predicated region
    $region18: #{tpu_custom_call.1} parent=1 // pred_check
      _
    $region19: #{tpu_custom_call.1} parent=1 // pred_check_branch
      %295 = sbr.rel (0) target = $region21
    $region20: #{tpu_custom_call.1} parent=1 // pred_region
      %297 = vsyncadd [#allocation4], 0
      %s298 = sshll.u32 [#allocation7], 4
      %s299 = int_to_ptr.vmem [resolvable:$true] %s298
      %s300 = sshll.u32 %s2, 4
      %s301 = int_to_ptr.hbm [resolvable:$true] %s300
      %306 = dma.vmem_to_hbm [thread:$0]  %s299, 1664, %s301, [#allocation4], 128, 128, 8
    $region21: #{tpu_custom_call.1} parent=1 // pred_fallthru
      _
    // Predicated region
    $region22: #{tpu_custom_call.1} parent=1 // pred_check
      _
    $region23: #{tpu_custom_call.1} parent=1 // pred_check_branch
      %308 = sbr.rel (0) target = $region25
    $region24: #{tpu_custom_call.1} parent=1 // pred_region
      %310 = dma.done [#allocation4], 1664
    $region25: #{tpu_custom_call.1} parent=1 // pred_fallthru
      _
    %311 = vsyncpa [#allocation3], 1
    %312 = vsyncpa [#allocation6], 1
    %313 = vsyncpa [#allocation4], 1

</llo_original>
